<compile_context>
chip_gen: v7x
topology: tpu7x:2x2x1
jax: 0.10.0
libtpu: 0.0.40
codegen_flags: <defaults>
</compile_context>

<pallas_src>
import numpy as np
import jax
import jax.numpy as jnp
from jax.experimental import pallas as pl
from jax.experimental.pallas import tpu as pltpu


# ---------------- fused Pallas kernel (one grid step == `bt` batch elements) ----------------

def fused_cnn_kernel(x_ref, m_ref, bias_ref, g_ref, s_ref, fcb_ref, o_ref):
    # x_ref:    (2, bt*14, 270) bf16  per conv-row-parity hp: rows = (b, i) pooled-H index,
    #                                 lanes = (kh, w_pad, cin) 3-row input window (K = 270)
    # m_ref:    (2, 270, 224)   bf16  kh-merged banded conv weights per conv-col-parity wp;
    #                                 output lanes = (j, cout)
    # bias_ref: (1, 224)        f32   conv bias tiled over the 14 pooled-W positions
    # g_ref:    (C, bt*14, 224) f32   AdaptiveAvgPool(7,7) folded into FC weights, tiled over bt
    # s_ref:    (bt, bt*14)     f32   per-element row-block summation matrix
    # fcb_ref:  (1, C)          f32
    # o_ref:    (bt, C)         f32
    #
    # conv3x3 + MaxPool2x2: 4 MXU matmuls (2 hp x 2 wp), M = bt*14, K = 270, N = 224.
    mp = None
    for hp in range(2):
        xs = x_ref[hp]                                   # (bt*14, 270), loaded once per hp
        for wp in range(2):
            t = jnp.dot(xs, m_ref[wp], preferred_element_type=jnp.float32)   # (bt*14, 224)
            # MaxPool2d(2,2) == elementwise max over the 4 (hp, wp) parity positions
            mp = t if mp is None else jnp.maximum(mp, t)
    # per-channel bias + ReLU commute with the 2x2 window max -> apply once afterwards
    mp = jnp.maximum(mp + bias_ref[...], 0.0)            # rows = (b, i), lanes = (j, c)

    # AdaptiveAvgPool((7,7)) folded into Linear(784 -> C): per-class VPU multiply,
    # MXU block-sum over each element's 14 rows, then a lane reduce.
    outs = []
    for n in range(g_ref.shape[0]):
        prod = mp * g_ref[n]                                                  # (bt*14, 224) VPU
        per_b = jnp.dot(s_ref[...], prod, preferred_element_type=jnp.float32)  # (bt, 224) MXU
        outs.append(jnp.sum(per_b, axis=1, keepdims=True))                   # (bt, 1) lane reduce
    z = outs[0] if len(outs) == 1 else jnp.concatenate(outs, axis=1)         # (bt, C)
    z = z + fcb_ref[...]
    o_ref[...] = 0.5 * (jnp.tanh(0.5 * z) + 1.0)          # numerically stable sigmoid


# ---------------- one-time parameter preprocessing (PyTorch layouts -> kernel layouts) ----------------

def prepare_params(conv_w, conv_b, fc_w, fc_b):
    """conv_w: (16,3,3,3)=(cout,cin,kh,kw); conv_b: (16,);
       fc_w: (num_classes, 784) with 784 flattened as (c,h,w); fc_b: (num_classes,)."""
    cw = np.asarray(conv_w, np.float32).transpose(2, 3, 1, 0)    # (kh, kw, cin, cout)
    Cin, Cout = cw.shape[2], cw.shape[3]
    Wp, Jw = 30, 14                                              # padded width, pooled width
    # Banded (Toeplitz) conv weights: M[kh, wp][(wq, ci), (j, co)] = cw[kh, kw, ci, co]
    # where wq = 2*j + wp + kw is the padded input column feeding output column w = 2*j + wp.
    M = np.zeros((3, 2, Wp * Cin, Jw * Cout), np.float32)
    for kh in range(3):
        for wp in range(2):
            for j in range(Jw):
                for kw in range(3):
                    wq = 2 * j + wp + kw
                    M[kh, wp, wq * Cin:(wq + 1) * Cin, j * Cout:(j + 1) * Cout] = cw[kh, kw]
    # kh-merge: stack the 3 bands along the contraction dim -> K = 270 (one deep MXU K-pass
    # on v6e/v7x instead of 3 pushes of K = 90, and no f32 partial-sum adds in the kernel).
    M2 = M.transpose(1, 0, 2, 3).reshape(2, 3 * Wp * Cin, Jw * Cout)         # (2, 270, 224)

    nc = fc_w.shape[0]
    fcw4 = np.asarray(fc_w, np.float32).reshape(nc, Cout, 7, 7)              # (C, c, h, w)
    # Fold the exact 2x2 AdaptiveAvgPool (14 -> 7) into the FC weights (both linear post-ReLU):
    #   G[n, i, (j, c)] = 0.25 * fc_w[n, c, i//2, j//2]
    rep = np.repeat(np.arange(7), 2)
    G = 0.25 * fcw4[:, :, rep, :][:, :, :, rep]                              # (C, c, 14, 14)
    G = G.transpose(0, 2, 3, 1).reshape(nc, 14, Jw * Cout)                   # (C, 14, 224)

    return {
        "M": jnp.asarray(M2, jnp.bfloat16),    # bf16: MXU-native on v5e/v6e/v7x
        "bias": jnp.tile(jnp.asarray(conv_b, jnp.float32), Jw).reshape(1, Jw * Cout),
        "G": jnp.asarray(G),
        "fcb": jnp.asarray(fc_b, jnp.float32).reshape(1, nc),
    }


# ---------------- forward wrapper ----------------

def _round_up(n, m):
    return ((n + m - 1) // m) * m


def simple_cnn_forward(x_nchw, prep, block_b=32):
    """x_nchw: (B, 3, 28, 28) float32 (PyTorch NCHW). Returns (B, num_classes)."""
    B, Cin, H, W = x_nchw.shape
    # TODO(synk): AdaptiveAvgPool2d bins for inputs other than 28x28 are non-uniform and not implemented.
    assert (Cin, H, W) == (3, 28, 28), "kernel specialized to 3x28x28 inputs"
    nc = prep["G"].shape[0]

    # ---- batch tiling: bt elements per grid step so conv matmuls have M = bt*14 rows ----
    if B <= 8:
        bt, grid_b = B, 1                       # tiny batch: one step, blocks == full dims
    else:
        # keep >= 2 grid steps (v7x: both TensorCores get work); bt multiple of 8 (tile-aligned)
        bt = min(block_b, _round_up(pl.cdiv(B, 2), 8))
        grid_b = pl.cdiv(B, bt)
    B_pad = bt * grid_b

    # ---- input layout prep (pure relayout, ~15 KB/element in bf16, read once by the kernel) ----
    xr = jnp.transpose(x_nchw, (0, 2, 3, 1))                              # NCHW -> NHWC
    xr = jnp.pad(xr, ((0, B_pad - B), (1, 1), (1, 1), (0, 0)))            # (B_pad, 30, 30, 3)
    xr = xr.reshape(B_pad, 30, 90).astype(jnp.bfloat16)                   # lanes = (w_pad, cin)
    # 3-row window per conv output row h: lanes = (kh, w_pad, cin), contraction depth 270
    xw = jnp.concatenate([xr[:, 0:28], xr[:, 1:29], xr[:, 2:30]], axis=-1)   # (B_pad, 28, 270)
    # split conv-output rows by parity (the MaxPool pairs) and flatten (b, i) into matmul rows
    xhp = jnp.stack([xw[:, 0::2].reshape(B_pad * 14, 270),
                     xw[:, 1::2].reshape(B_pad * 14, 270)], axis=0)          # (2, B_pad*14, 270)

    # fused-pool FC weights tiled over the batch tile; per-element 14-row summation matrix
    g_tiled = jnp.tile(prep["G"], (1, bt, 1))                                # (C, bt*14, 224)
    s_mat = jnp.asarray(np.kron(np.eye(bt, dtype=np.float32),
                                np.ones((1, 14), np.float32)))               # (bt, bt*14)

    out = pl.pallas_call(
        fused_cnn_kernel,
        out_shape=jax.ShapeDtypeStruct((B_pad, nc), jnp.float32),
        grid=(grid_b,),
        in_specs=[
            pl.BlockSpec((2, bt * 14, 270), lambda b: (0, b, 0)),
            pl.BlockSpec((2, 270, 224), lambda b: (0, 0, 0)),
            pl.BlockSpec((1, 224), lambda b: (0, 0)),
            pl.BlockSpec((nc, bt * 14, 224), lambda b: (0, 0, 0)),
            pl.BlockSpec((bt, bt * 14), lambda b: (0, 0)),
            pl.BlockSpec((1, nc), lambda b: (0, 0)),
        ],
        out_specs=pl.BlockSpec((bt, nc), lambda b: (b, 0)),
        compiler_params=pltpu.CompilerParams(
            dimension_semantics=("parallel",),   # v7x: shard grid steps across 2 TensorCores
        ),
    )(xhp, prep["M"], prep["bias"], g_tiled, s_mat, prep["fcb"])
    return out[:B]


# ---------------- pure-JAX f32 reference (correctness check only) ----------------

def reference_forward(x, conv_w, conv_b, fc_w, fc_b):
    B = x.shape[0]
    conv = jax.lax.conv_general_dilated(
        x, conv_w, window_strides=(1, 1), padding="SAME",
        dimension_numbers=("NCHW", "OIHW", "NCHW")) + conv_b[None, :, None, None]
    r = jnp.maximum(conv, 0.0)                                         # ReLU
    mp = jnp.max(r.reshape(B, 16, 14, 2, 14, 2), axis=(3, 5))          # MaxPool2d(2,2)
    ap = jnp.mean(mp.reshape(B, 16, 7, 2, 7, 2), axis=(3, 5))          # AdaptiveAvgPool((7,7))
    z = ap.reshape(B, -1) @ fc_w.T + fc_b
    return jax.nn.sigmoid(z)


# ---------------- main ----------------

if __name__ == "__main__":
    num_classes = 1
    key = jax.random.PRNGKey(0)
    k1, k2, k3, k4, k5 = jax.random.split(key, 5)

    # deterministic synthetic parameters in PyTorch layouts (SimpleCNN.__init__ shapes)
    conv_w = 0.1 * jax.random.normal(k1, (16, 3, 3, 3), jnp.float32)   # (cout, cin, kh, kw)
    conv_b = 0.1 * jax.random.normal(k2, (16,), jnp.float32)
    fc_w = 0.05 * jax.random.normal(k3, (num_classes, 16 * 7 * 7), jnp.float32)
    fc_b = 0.05 * jax.random.normal(k4, (num_classes,), jnp.float32)

    prep = prepare_params(conv_w, conv_b, fc_w, fc_b)                  # one-time weight prep

    # input: NCHW, small example batch of 2, 3 channels, 28x28
    x = jax.random.normal(k5, (2, 3, 28, 28), jnp.float32)

    fwd = jax.jit(simple_cnn_forward)
    out = jax.block_until_ready(fwd(x, prep))
    assert out.shape == (2, num_classes), out.shape
    assert bool(jnp.all(jnp.isfinite(out)))
    assert bool(jnp.all((out >= 0.0) & (out <= 1.0)))

    ref = reference_forward(x, conv_w, conv_b, fc_w, fc_b)
    max_err = float(jnp.max(jnp.abs(out - ref)))
    assert max_err < 5e-2, f"max abs error vs reference = {max_err}"

    print("KERNEL_OK")
</pallas_src>

<mosaic_0001>
module attributes {stable_mosaic.version = 11 : i64} {
  func.func @fused_cnn_kernel(%arg0: i32, %arg1: memref<2x28x270xbf16, #tpu.memory_space<vmem>>, %arg2: memref<2x270x224xbf16, #tpu.memory_space<vmem>>, %arg3: memref<1x224xf32, #tpu.memory_space<vmem>>, %arg4: memref<1x28x224xf32, #tpu.memory_space<vmem>>, %arg5: memref<2x28xf32, #tpu.memory_space<vmem>>, %arg6: memref<1x1xf32, #tpu.memory_space<vmem>>, %arg7: memref<2x1xf32, #tpu.memory_space<vmem>>) attributes {dimension_semantics = [#tpu.dimension_semantics<parallel>], iteration_bounds = array<i64: 1>, scalar_prefetch = 0 : i64, scratch_operands = 0 : i64, tpu.core_type = #tpu.core_type<tc>, window_params = [{transform_indices = @transform_0, window_bounds = array<i64: 2, 28, 270>}, {pipeline_mode = #tpu.pipeline_mode<synchronous>, transform_indices = @transform_1, window_bounds = array<i64: 2, 270, 224>}, {pipeline_mode = #tpu.pipeline_mode<synchronous>, transform_indices = @transform_2, window_bounds = array<i64: 1, 224>}, {pipeline_mode = #tpu.pipeline_mode<synchronous>, transform_indices = @transform_3, window_bounds = array<i64: 1, 28, 224>}, {pipeline_mode = #tpu.pipeline_mode<synchronous>, transform_indices = @transform_4, window_bounds = array<i64: 2, 28>}, {pipeline_mode = #tpu.pipeline_mode<synchronous>, transform_indices = @transform_5, window_bounds = array<i64: 1, 1>}, {transform_indices = @transform_6, window_bounds = array<i64: 2, 1>}]} {
    %c0 = arith.constant 0 : index
    %c0_0 = arith.constant 0 : index
    %c0_1 = arith.constant 0 : index
    %0 = vector.load %arg1[%c0, %c0_0, %c0_1] : memref<2x28x270xbf16, #tpu.memory_space<vmem>>, vector<1x28x270xbf16>
    %1 = vector.shape_cast %0 : vector<1x28x270xbf16> to vector<28x270xbf16>
    %c0_2 = arith.constant 0 : index
    %c0_3 = arith.constant 0 : index
    %c0_4 = arith.constant 0 : index
    %2 = vector.load %arg2[%c0_2, %c0_3, %c0_4] : memref<2x270x224xbf16, #tpu.memory_space<vmem>>, vector<1x270x224xbf16>
    %3 = vector.shape_cast %2 : vector<1x270x224xbf16> to vector<270x224xbf16>
    %cst = arith.constant dense<0.000000e+00> : vector<28x224xf32>
    %4 = tpu.matmul %1, %3, %cst {dimension_numbers = #tpu.dot_dimension_numbers<[1], [0], [0], [1], [0, 0, 1, 1], [], []>} : vector<28x270xbf16>, vector<270x224xbf16>, vector<28x224xf32> -> vector<28x224xf32>
    %c1 = arith.constant 1 : index
    %c0_5 = arith.constant 0 : index
    %c0_6 = arith.constant 0 : index
    %5 = vector.load %arg2[%c1, %c0_5, %c0_6] : memref<2x270x224xbf16, #tpu.memory_space<vmem>>, vector<1x270x224xbf16>
    %6 = vector.shape_cast %5 : vector<1x270x224xbf16> to vector<270x224xbf16>
    %cst_7 = arith.constant dense<0.000000e+00> : vector<28x224xf32>
    %7 = tpu.matmul %1, %6, %cst_7 {dimension_numbers = #tpu.dot_dimension_numbers<[1], [0], [0], [1], [0, 0, 1, 1], [], []>} : vector<28x270xbf16>, vector<270x224xbf16>, vector<28x224xf32> -> vector<28x224xf32>
    %8 = arith.maximumf %4, %7 : vector<28x224xf32>
    %c1_8 = arith.constant 1 : index
    %c0_9 = arith.constant 0 : index
    %c0_10 = arith.constant 0 : index
    %9 = vector.load %arg1[%c1_8, %c0_9, %c0_10] : memref<2x28x270xbf16, #tpu.memory_space<vmem>>, vector<1x28x270xbf16>
    %10 = vector.shape_cast %9 : vector<1x28x270xbf16> to vector<28x270xbf16>
    %c0_11 = arith.constant 0 : index
    %c0_12 = arith.constant 0 : index
    %c0_13 = arith.constant 0 : index
    %11 = vector.load %arg2[%c0_11, %c0_12, %c0_13] : memref<2x270x224xbf16, #tpu.memory_space<vmem>>, vector<1x270x224xbf16>
    %12 = vector.shape_cast %11 : vector<1x270x224xbf16> to vector<270x224xbf16>
    %cst_14 = arith.constant dense<0.000000e+00> : vector<28x224xf32>
    %13 = tpu.matmul %10, %12, %cst_14 {dimension_numbers = #tpu.dot_dimension_numbers<[1], [0], [0], [1], [0, 0, 1, 1], [], []>} : vector<28x270xbf16>, vector<270x224xbf16>, vector<28x224xf32> -> vector<28x224xf32>
    %14 = arith.maximumf %8, %13 : vector<28x224xf32>
    %c1_15 = arith.constant 1 : index
    %c0_16 = arith.constant 0 : index
    %c0_17 = arith.constant 0 : index
    %15 = vector.load %arg2[%c1_15, %c0_16, %c0_17] : memref<2x270x224xbf16, #tpu.memory_space<vmem>>, vector<1x270x224xbf16>
    %16 = vector.shape_cast %15 : vector<1x270x224xbf16> to vector<270x224xbf16>
    %cst_18 = arith.constant dense<0.000000e+00> : vector<28x224xf32>
    %17 = tpu.matmul %10, %16, %cst_18 {dimension_numbers = #tpu.dot_dimension_numbers<[1], [0], [0], [1], [0, 0, 1, 1], [], []>} : vector<28x270xbf16>, vector<270x224xbf16>, vector<28x224xf32> -> vector<28x224xf32>
    %18 = arith.maximumf %14, %17 : vector<28x224xf32>
    %c0_19 = arith.constant 0 : index
    %c0_20 = arith.constant 0 : index
    %19 = vector.load %arg3[%c0_19, %c0_20] : memref<1x224xf32, #tpu.memory_space<vmem>>, vector<1x224xf32>
    %20 = vector.broadcast %19 : vector<1x224xf32> to vector<28x224xf32>
    %21 = arith.addf %18, %20 : vector<28x224xf32>
    %cst_21 = arith.constant 0.000000e+00 : f32
    %22 = vector.broadcast %cst_21 : f32 to vector<28x224xf32>
    %23 = arith.maximumf %21, %22 : vector<28x224xf32>
    %c0_22 = arith.constant 0 : index
    %c0_23 = arith.constant 0 : index
    %c0_24 = arith.constant 0 : index
    %24 = vector.load %arg4[%c0_22, %c0_23, %c0_24] : memref<1x28x224xf32, #tpu.memory_space<vmem>>, vector<1x28x224xf32>
    %25 = vector.shape_cast %24 : vector<1x28x224xf32> to vector<28x224xf32>
    %26 = arith.mulf %23, %25 : vector<28x224xf32>
    %c0_25 = arith.constant 0 : index
    %c0_26 = arith.constant 0 : index
    %27 = vector.load %arg5[%c0_25, %c0_26] : memref<2x28xf32, #tpu.memory_space<vmem>>, vector<2x28xf32>
    %cst_27 = arith.constant dense<0.000000e+00> : vector<2x224xf32>
    %28 = tpu.matmul %27, %26, %cst_27 {dimension_numbers = #tpu.dot_dimension_numbers<[1], [0], [0], [1], [0, 0, 1, 1], [], []>} : vector<2x28xf32>, vector<28x224xf32>, vector<2x224xf32> -> vector<2x224xf32>
    %cst_28 = arith.constant dense<0.000000e+00> : vector<2xf32>
    %29 = vector.multi_reduction <add>, %28, %cst_28 [1] : vector<2x224xf32> to vector<2xf32>
    %30 = vector.shape_cast %29 : vector<2xf32> to vector<2x1xf32>
    %c0_29 = arith.constant 0 : index
    %c0_30 = arith.constant 0 : index
    %31 = vector.load %arg6[%c0_29, %c0_30] : memref<1x1xf32, #tpu.memory_space<vmem>>, vector<1x1xf32>
    %32 = vector.broadcast %31 : vector<1x1xf32> to vector<2x1xf32>
    %33 = arith.addf %30, %32 : vector<2x1xf32>
    %cst_31 = arith.constant 5.000000e-01 : f32
    %34 = vector.broadcast %cst_31 : f32 to vector<2x1xf32>
    %35 = arith.mulf %34, %33 : vector<2x1xf32>
    %36 = math.tanh %35 : vector<2x1xf32>
    %cst_32 = arith.constant 1.000000e+00 : f32
    %37 = vector.broadcast %cst_32 : f32 to vector<2x1xf32>
    %38 = arith.addf %36, %37 : vector<2x1xf32>
    %cst_33 = arith.constant 5.000000e-01 : f32
    %39 = vector.broadcast %cst_33 : f32 to vector<2x1xf32>
    %40 = arith.mulf %39, %38 : vector<2x1xf32>
    %c0_34 = arith.constant 0 : index
    %c0_35 = arith.constant 0 : index
    %41 = vector.load %arg7[%c0_34, %c0_35] : memref<2x1xf32, #tpu.memory_space<vmem>>, vector<2x1xf32>
    tpu.vector_store %arg7[%c0_34, %c0_35], %40 {strides = array<i32>} : memref<2x1xf32, #tpu.memory_space<vmem>>, vector<2x1xf32>,
    return
  }
  func.func @transform_0(%arg0: i32) -> (i32, i32, i32) {
    %c0_i32 = arith.constant 0 : i32
    %c0_i32_0 = arith.constant 0 : i32
    %c0_i32_1 = arith.constant 0 : i32
    return %c0_i32, %arg0, %c0_i32_0 : i32, i32, i32
  }
  func.func @transform_1(%arg0: i32) -> (i32, i32, i32) {
    %c0_i32 = arith.constant 0 : i32
    %c0_i32_0 = arith.constant 0 : i32
    %c0_i32_1 = arith.constant 0 : i32
    %c0_i32_2 = arith.constant 0 : i32
    return %c0_i32, %c0_i32_0, %c0_i32_1 : i32, i32, i32
  }
  func.func @transform_2(%arg0: i32) -> (i32, i32) {
    %c0_i32 = arith.constant 0 : i32
    %c0_i32_0 = arith.constant 0 : i32
    %c0_i32_1 = arith.constant 0 : i32
    return %c0_i32, %c0_i32_0 : i32, i32
  }
  func.func @transform_3(%arg0: i32) -> (i32, i32, i32) {
    %c0_i32 = arith.constant 0 : i32
    %c0_i32_0 = arith.constant 0 : i32
    %c0_i32_1 = arith.constant 0 : i32
    %c0_i32_2 = arith.constant 0 : i32
    return %c0_i32, %c0_i32_0, %c0_i32_1 : i32, i32, i32
  }
  func.func @transform_4(%arg0: i32) -> (i32, i32) {
    %c0_i32 = arith.constant 0 : i32
    %c0_i32_0 = arith.constant 0 : i32
    %c0_i32_1 = arith.constant 0 : i32
    return %c0_i32, %c0_i32_0 : i32, i32
  }
  func.func @transform_5(%arg0: i32) -> (i32, i32) {
    %c0_i32 = arith.constant 0 : i32
    %c0_i32_0 = arith.constant 0 : i32
    %c0_i32_1 = arith.constant 0 : i32
    return %c0_i32, %c0_i32_0 : i32, i32
  }
  func.func @transform_6(%arg0: i32) -> (i32, i32) {
    %c0_i32 = arith.constant 0 : i32
    %c0_i32_0 = arith.constant 0 : i32
    return %arg0, %c0_i32 : i32, i32
  }
}

</mosaic_0001>

<llo_original>
// kernel: simple_cnn_forward.1
$region0: #{simple_cnn_forward.1}
  #allocation0 [shape = 'u32[]', space=smem, size = 0x4, offset = 0x4, fixed_abs, tag = 'smem constant byte address 0x4 - core index']
  #allocation1 [shape = 'u32[144,128]{1,0:T(1,128)}', space=vmem, size = 0x12000, scoped, tag = 'internal scratch']
  #allocation2 [shape = 'f32[1,1]{1,0:T(1,128)S(1)}', space=vmem, size = 0x200, scoped, tag = 'scoped memory for simple_cnn_forward.1']
  %s0 = inlined_call_operand.vmem [shape: bf16[2,28,270], index: 0, kind: input, shape index: {}]
  %s1 = inlined_call_operand.vmem [shape: bf16[2,270,224], index: 1, kind: input, shape index: {}]
  %s2 = inlined_call_operand.vmem [shape: f32[1,224], index: 2, kind: input, shape index: {}]
  %s3 = inlined_call_operand.vmem [shape: f32[1,28,224], index: 3, kind: input, shape index: {}]
  %s4 = inlined_call_operand.vmem [shape: f32[2,28], index: 4, kind: input, shape index: {}]
  %s5 = inlined_call_operand.<no memory space> [shape: f32[1,1], index: 5, kind: input, shape index: {}]
  %s6 = inlined_call_operand.vmem [shape: f32[2,1], index: 6, kind: output, shape index: {}]
  %s7 = sld [smem:[#allocation0]]
  $region34: #{simple_cnn_forward.1} parent=0
    _
  %s9 = ssub.s32 1, %s7
  %s10 = scalar_select 0, %s9, %s7
  %v11 = vstv %s5
  %12 = vst [vmem:[#allocation2] sm:$0x1] %v11
  // Predicated region
  $region2: #{simple_cnn_forward.1} parent=0 // pred_check
    _
  $region3: #{simple_cnn_forward.1} parent=0 // pred_check_branch
    %14 = sbr.rel (0) target = $region5
  $region4: #{simple_cnn_forward.1} parent=0 // pred_region
    _
  $region5: #{simple_cnn_forward.1} parent=0 // pred_fallthru
    _
  // Predicated region
  $region6: #{simple_cnn_forward.1} parent=0 // pred_check
    _
  $region7: #{simple_cnn_forward.1} parent=0 // pred_check_branch
    %16 = sbr.rel (0) target = $region9
  $region8: #{simple_cnn_forward.1} parent=0 // pred_region
    _
  $region9: #{simple_cnn_forward.1} parent=0 // pred_fallthru
    _
  // Predicated region
  $region10: #{simple_cnn_forward.1} parent=0 // pred_check
    _
  $region11: #{simple_cnn_forward.1} parent=0 // pred_check_branch
    %18 = sbr.rel (0) target = $region13
  $region12: #{simple_cnn_forward.1} parent=0 // pred_region
    _
  $region13: #{simple_cnn_forward.1} parent=0 // pred_fallthru
    _
  // Predicated region
  $region14: #{simple_cnn_forward.1} parent=0 // pred_check
    _
  $region15: #{simple_cnn_forward.1} parent=0 // pred_check_branch
    %20 = sbr.rel (0) target = $region17
  $region16: #{simple_cnn_forward.1} parent=0 // pred_region
    _
  $region17: #{simple_cnn_forward.1} parent=0 // pred_fallthru
    _
  // Predicated region
  $region18: #{simple_cnn_forward.1} parent=0 // pred_check
    _
  $region19: #{simple_cnn_forward.1} parent=0 // pred_check_branch
    %22 = sbr.rel (0) target = $region21
  $region20: #{simple_cnn_forward.1} parent=0 // pred_region
    _
  $region21: #{simple_cnn_forward.1} parent=0 // pred_fallthru
    _
  // Predicated region
  $region22: #{simple_cnn_forward.1} parent=0 // pred_check
    _
  $region23: #{simple_cnn_forward.1} parent=0 // pred_check_branch
    %24 = sbr.rel (0) target = $region25
  $region24: #{simple_cnn_forward.1} parent=0 // pred_region
    _
  $region25: #{simple_cnn_forward.1} parent=0 // pred_fallthru
    _
  %v26 = vld [vmem:[%s0] sm:$0xff]
  %v27 = vld [vmem:[%s0 + $0x8] sm:$0xf]
  %v28 = vld [vmem:[%s0 + $0xc] sm:$0xff]
  %v29 = vld [vmem:[%s0 + $0x14] sm:$0xf]
  %v30 = vld [vmem:[%s0 + $0x18] sm:$0xff]
  %v31 = vld [vmem:[%s0 + $0x20] sm:$0xf]
  %v32 = vld [vmem:[%s0 + $0x24] sm:$0x33]
  %v33 = vld [vmem:[%s0 + $0x2c] sm:$0x3]
  %v34 = vld [vmem:[%s1] sm:$0xff]
  %v35 = vld [vmem:[%s1 + $0x8] sm:$0xff]
  %v36 = vld [vmem:[%s1 + $0x10] sm:$0xff]
  %v37 = vld [vmem:[%s1 + $0x18] sm:$0xff]
  %v38 = vld [vmem:[%s1 + $0x20] sm:$0xff]
  %v39 = vld [vmem:[%s1 + $0x28] sm:$0xff]
  %v40 = vld [vmem:[%s1 + $0x30] sm:$0xff]
  %v41 = vld [vmem:[%s1 + $0x38] sm:$0xff]
  %v42 = vld [vmem:[%s1 + $0x40] sm:$0xff]
  %v43 = vld [vmem:[%s1 + $0x48] sm:$0xff]
  %v44 = vld [vmem:[%s1 + $0x50] sm:$0xff]
  %v45 = vld [vmem:[%s1 + $0x58] sm:$0xff]
  %v46 = vld [vmem:[%s1 + $0x60] sm:$0xff]
  %v47 = vld [vmem:[%s1 + $0x68] sm:$0xff]
  %v48 = vld [vmem:[%s1 + $0x70] sm:$0xff]
  %v49 = vld [vmem:[%s1 + $0x78] sm:$0xff]
  %v50 = vld [vmem:[%s1 + $0x80] sm:$0xff]
  %v51 = vld [vmem:[%s1 + $0x88] sm:$0xff]
  %v52 = vld [vmem:[%s1 + $0x90] sm:$0xff]
  %v53 = vld [vmem:[%s1 + $0x98] sm:$0xff]
  %v54 = vld [vmem:[%s1 + $0xa0] sm:$0xff]
  %v55 = vld [vmem:[%s1 + $0xa8] sm:$0xff]
  %v56 = vld [vmem:[%s1 + $0xb0] sm:$0xff]
  %v57 = vld [vmem:[%s1 + $0xb8] sm:$0xff]
  %v58 = vld [vmem:[%s1 + $0xc0] sm:$0xff]
  %v59 = vld [vmem:[%s1 + $0xc8] sm:$0xff]
  %v60 = vld [vmem:[%s1 + $0xd0] sm:$0xff]
  %v61 = vld [vmem:[%s1 + $0xd8] sm:$0xff]
  %v62 = vld [vmem:[%s1 + $0xe0] sm:$0xff]
  %v63 = vld [vmem:[%s1 + $0xe8] sm:$0xff]
  %v64 = vld [vmem:[%s1 + $0xf0] sm:$0xff]
  %v65 = vld [vmem:[%s1 + $0xf8] sm:$0xff]
  %v66 = vld [vmem:[%s1 + $0x100] sm:$0xff]
  %v67 = vld [vmem:[%s1 + $0x108] sm:$0x77]
  %v76 = vunpack.c.l.b16 %v26
  %v77 = vunpack.c.h.b16 %v26
  %v78 = vunpack.c.l.b16 %v27
  %v79 = vunpack.c.l.b16 %v28
  %v80 = vunpack.c.h.b16 %v28
  %v81 = vunpack.c.l.b16 %v29
  %v82 = vunpack.c.l.b16 %v30
  %v83 = vunpack.c.h.b16 %v30
  %v84 = vunpack.c.l.b16 %v31
  %v85 = vunpack.c.l.b16 %v32
  %v86 = vunpack.c.h.b16 %v32
  %v87 = vunpack.c.l.b16 %v33
  %v88 = vpack.c.b16 %v79, %v76
  %v89 = vpack.c.b16 %v80, %v77
  %v90 = vpack.c.b16 %v81, %v78
  %v91 = vpack.c.b16 %v85, %v82
  %v92 = vpack.c.b16 %v86, %v83
  %v93 = vpack.c.b16 %v87, %v84
  %v132 = vunpack.c.l.b16 %v34
  %v133 = vunpack.c.h.b16 %v34
  %v134 = vunpack.c.l.b16 %v35
  %v135 = vunpack.c.h.b16 %v35
  %v136 = vunpack.c.l.b16 %v36
  %v137 = vunpack.c.h.b16 %v36
  %v138 = vunpack.c.l.b16 %v37
  %v139 = vunpack.c.h.b16 %v37
  %v140 = vunpack.c.l.b16 %v38
  %v141 = vunpack.c.h.b16 %v38
  %v142 = vunpack.c.l.b16 %v39
  %v143 = vunpack.c.h.b16 %v39
  %v144 = vunpack.c.l.b16 %v40
  %v145 = vunpack.c.h.b16 %v40
  %v146 = vunpack.c.l.b16 %v41
  %v147 = vunpack.c.h.b16 %v41
  %v148 = vunpack.c.l.b16 %v42
  %v149 = vunpack.c.h.b16 %v42
  %v150 = vunpack.c.l.b16 %v43
  %v151 = vunpack.c.h.b16 %v43
  %v152 = vunpack.c.l.b16 %v44
  %v153 = vunpack.c.h.b16 %v44
  %v154 = vunpack.c.l.b16 %v45
  %v155 = vunpack.c.h.b16 %v45
  %v156 = vunpack.c.l.b16 %v46
  %v157 = vunpack.c.h.b16 %v46
  %v158 = vunpack.c.l.b16 %v47
  %v159 = vunpack.c.h.b16 %v47
  %v160 = vunpack.c.l.b16 %v48
  %v161 = vunpack.c.h.b16 %v48
  %v162 = vunpack.c.l.b16 %v49
  %v163 = vunpack.c.h.b16 %v49
  %v164 = vunpack.c.l.b16 %v50
  %v165 = vunpack.c.h.b16 %v50
  %v166 = vunpack.c.l.b16 %v51
  %v167 = vunpack.c.h.b16 %v51
  %v168 = vunpack.c.l.b16 %v52
  %v169 = vunpack.c.h.b16 %v52
  %v170 = vunpack.c.l.b16 %v53
  %v171 = vunpack.c.h.b16 %v53
  %v172 = vunpack.c.l.b16 %v54
  %v173 = vunpack.c.h.b16 %v54
  %v174 = vunpack.c.l.b16 %v55
  %v175 = vunpack.c.h.b16 %v55
  %v176 = vunpack.c.l.b16 %v56
  %v177 = vunpack.c.h.b16 %v56
  %v178 = vunpack.c.l.b16 %v57
  %v179 = vunpack.c.h.b16 %v57
  %v180 = vunpack.c.l.b16 %v58
  %v181 = vunpack.c.h.b16 %v58
  %v182 = vunpack.c.l.b16 %v59
  %v183 = vunpack.c.h.b16 %v59
  %v184 = vunpack.c.l.b16 %v60
  %v185 = vunpack.c.h.b16 %v60
  %v186 = vunpack.c.l.b16 %v61
  %v187 = vunpack.c.h.b16 %v61
  %v188 = vunpack.c.l.b16 %v62
  %v189 = vunpack.c.h.b16 %v62
  %v190 = vunpack.c.l.b16 %v63
  %v191 = vunpack.c.h.b16 %v63
  %v192 = vunpack.c.l.b16 %v64
  %v193 = vunpack.c.h.b16 %v64
  %v194 = vunpack.c.l.b16 %v65
  %v195 = vunpack.c.h.b16 %v65
  %v196 = vunpack.c.l.b16 %v66
  %v197 = vunpack.c.h.b16 %v66
  %v198 = vunpack.c.l.b16 %v67
  %v199 = vunpack.c.h.b16 %v67
  %v200 = vpack.c.b16 %v134, %v132
  %v201 = vpack.c.b16 %v135, %v133
  %v202 = vpack.c.b16 %v138, %v136
  %v203 = vpack.c.b16 %v139, %v137
  %v204 = vpack.c.b16 %v142, %v140
  %v205 = vpack.c.b16 %v143, %v141
  %v206 = vpack.c.b16 %v146, %v144
  %v207 = vpack.c.b16 %v147, %v145
  %v208 = vpack.c.b16 %v150, %v148
  %v209 = vpack.c.b16 %v151, %v149
  %v210 = vpack.c.b16 %v154, %v152
  %v211 = vpack.c.b16 %v155, %v153
  %v212 = vpack.c.b16 %v158, %v156
  %v213 = vpack.c.b16 %v159, %v157
  %v214 = vpack.c.b16 %v162, %v160
  %v215 = vpack.c.b16 %v163, %v161
  %v216 = vpack.c.b16 %v166, %v164
  %v217 = vpack.c.b16 %v167, %v165
  %v218 = vpack.c.b16 %v170, %v168
  %v219 = vpack.c.b16 %v171, %v169
  %v220 = vpack.c.b16 %v174, %v172
  %v221 = vpack.c.b16 %v175, %v173
  %v222 = vpack.c.b16 %v178, %v176
  %v223 = vpack.c.b16 %v179, %v177
  %v224 = vpack.c.b16 %v182, %v180
  %v225 = vpack.c.b16 %v183, %v181
  %v226 = vpack.c.b16 %v186, %v184
  %v227 = vpack.c.b16 %v187, %v185
  %v228 = vpack.c.b16 %v190, %v188
  %v229 = vpack.c.b16 %v191, %v189
  %v230 = vpack.c.b16 %v194, %v192
  %v231 = vpack.c.b16 %v195, %v193
  %v232 = vpack.c.b16 %v198, %v196
  %v233 = vpack.c.b16 %v199, %v197
  %vm266 = vcmask 113664
  %v268 = vsel %vm266, %v90, 0
  %v271 = vsel %vm266, %v93, 0
  %vm273 = vcmask 1046528
  %v275 = vsel %vm273, %v232, 0
  %v278 = vsel %vm273, %v233, 0
  %280 = vmatprep.subr.bf16.mxu0 %v201
  %281 = vmatpush1.bf16.msra.mxu0 %v200
  %282 = vmatprep.subr.bf16.mxu0 %v203
  %283 = vmatpush1.bf16.msra.mxu0 %v202
  %284 = vmatprep.subr.bf16.mxu0 %v205
  %285 = vmatpush1.bf16.msra.mxu0 %v204
  %286 = vmatprep.subr.bf16.mxu0 %v207
  %287 = vmatpush1.bf16.msra.mxu0 %v206
  %288 = vmatprep.subr.bf16.mxu0 %v209
  %289 = vmatpush1.bf16.msra.mxu0 %v208
  %290 = vmatprep.subr.bf16.mxu0 %v211
  %291 = vmatpush1.bf16.msra.mxu0 %v210
  %292 = vmatprep.subr.bf16.mxu0 %v213
  %293 = vmatpush1.bf16.msra.mxu0 %v212
  %294 = vmatprep.subr.bf16.mxu0 %v215
  %295 = vmatpush1.bf16.msra.mxu0 %v214
  %296 = vmatprep.subr.bf16.mxu0 %v217
  %297 = vmatpush1.bf16.msra.mxu0 %v216
  %298 = vmatprep.subr.bf16.mxu0 %v219
  %299 = vmatpush1.bf16.msra.mxu0 %v218
  %300 = vmatprep.subr.bf16.mxu0 %v221
  %301 = vmatpush1.bf16.msra.mxu0 %v220
  %302 = vmatprep.subr.bf16.mxu0 %v223
  %303 = vmatpush1.bf16.msra.mxu0 %v222
  %304 = vmatprep.subr.bf16.mxu0 %v225
  %305 = vmatpush1.bf16.msra.mxu0 %v224
  %306 = vmatprep.subr.bf16.mxu0 %v227
  %307 = vmatpush1.bf16.msra.mxu0 %v226
  %308 = vmatprep.subr.bf16.mxu0 %v229
  %309 = vmatpush1.bf16.msra.mxu0 %v228
  %310 = vmatprep.subr.bf16.mxu0 %v231
  %311 = vmatpush1.bf16.msra.mxu0 %v230
  %312 = vmatprep.mubr.bf16.mxu0 %v89
  %313 = vmatmul.mubr.bf16.gmra.mrb[0].mxu0 %v88
  %v314 = vpop.f32.mrb[0].mxu0
  %v315 = vadd.f32 0.0, %v314
  %v316 = vpop.f32.mrb[0].mxu0
  %v317 = vadd.f32 0.0, %v316
  %v318 = vpop.f32.mrb[0].mxu0
  %v319 = vadd.f32 0.0, %v318
  %v320 = vpop.f32.mrb[0].mxu0
  %v321 = vadd.f32 0.0, %v320
  %322 = vmatprep.mubr.bf16.mxu0 %v92
  %323 = vmatmul.mubr.bf16.gmra.mrb[0].mxu0 %v91
  %v324 = vpop.f32.mrb[0].mxu0
  %v325 = vadd.f32 0.0, %v324
  %v326 = vpop.f32.mrb[0].mxu0
  %v327 = vadd.f32 0.0, %v326
  %v328 = vpop.f32.mrb[0].mxu0
  %v329 = vadd.f32 0.0, %v328
  %v330 = vpop.f32.mrb[0].mxu0
  %v331 = vadd.f32 0.0, %v330
  %332 = vdwg.mxu0
  %333 = vmatprep.subr.bf16.mxu0 %v278
  %334 = vmatpush1.bf16.msra.mxu0 %v275
  %335 = vmatprep.subr.bf16.mxu0 0
  %336 = vmatpush1.bf16.msra.mxu0 0
  %337 = vmatprep.subr.bf16.mxu0 0
  %338 = vmatpush1.bf16.msra.mxu0 0
  %339 = vmatprep.subr.bf16.mxu0 0
  %340 = vmatpush1.bf16.msra.mxu0 0
  %341 = vmatprep.subr.bf16.mxu0 0
  %342 = vmatpush1.bf16.msra.mxu0 0
  %343 = vmatprep.subr.bf16.mxu0 0
  %344 = vmatpush1.bf16.msra.mxu0 0
  %345 = vmatprep.subr.bf16.mxu0 0
  %346 = vmatpush1.bf16.msra.mxu0 0
  %347 = vmatprep.subr.bf16.mxu0 0
  %348 = vmatpush1.bf16.msra.mxu0 0
  %349 = vmatprep.subr.bf16.mxu0 0
  %350 = vmatpush1.bf16.msra.mxu0 0
  %351 = vmatprep.subr.bf16.mxu0 0
  %352 = vmatpush1.bf16.msra.mxu0 0
  %353 = vmatprep.subr.bf16.mxu0 0
  %354 = vmatpush1.bf16.msra.mxu0 0
  %355 = vmatprep.subr.bf16.mxu0 0
  %356 = vmatpush1.bf16.msra.mxu0 0
  %357 = vmatprep.subr.bf16.mxu0 0
  %358 = vmatpush1.bf16.msra.mxu0 0
  %359 = vmatprep.subr.bf16.mxu0 0
  %360 = vmatpush1.bf16.msra.mxu0 0
  %361 = vmatprep.subr.bf16.mxu0 0
  %362 = vmatpush1.bf16.msra.mxu0 0
  %363 = vmatprep.subr.bf16.mxu0 0
  %364 = vmatpush1.bf16.msra.mxu0 0
  %365 = vmatprep.mubr.bf16.mxu0 0
  %366 = vmatmul.mubr.bf16.gmra.mrb[0].mxu0 %v268
  %v367 = vpop.f32.mrb[0].mxu0
  %v368 = vadd.f32 %v315, %v367
  %v369 = vpop.f32.mrb[0].mxu0
  %v370 = vadd.f32 %v317, %v369
  %v371 = vpop.f32.mrb[0].mxu0
  %v372 = vadd.f32 %v319, %v371
  %v373 = vpop.f32.mrb[0].mxu0
  %v374 = vadd.f32 %v321, %v373
  %375 = vmatprep.mubr.bf16.mxu0 0
  %376 = vmatmul.mubr.bf16.gmra.mrb[0].mxu0 %v271
  %v377 = vpop.f32.mrb[0].mxu0
  %v378 = vadd.f32 %v325, %v377
  %v379 = vpop.f32.mrb[0].mxu0
  %v380 = vadd.f32 %v327, %v379
  %v381 = vpop.f32.mrb[0].mxu0
  %v382 = vadd.f32 %v329, %v381
  %v383 = vpop.f32.mrb[0].mxu0
  %v384 = vadd.f32 %v331, %v383
  %385 = vdwg.mxu0
  %s386 = scalar_lea.vmem %s1, 272
  %v387 = vld [vmem:[%s386] sm:$0xff]
  %v388 = vld [vmem:[%s386 + $0x8] sm:$0xff]
  %v389 = vld [vmem:[%s386 + $0x10] sm:$0xff]
  %v390 = vld [vmem:[%s386 + $0x18] sm:$0xff]
  %v391 = vld [vmem:[%s386 + $0x20] sm:$0xff]
  %v392 = vld [vmem:[%s386 + $0x28] sm:$0xff]
  %v393 = vld [vmem:[%s386 + $0x30] sm:$0xff]
  %v394 = vld [vmem:[%s386 + $0x38] sm:$0xff]
  %v395 = vld [vmem:[%s386 + $0x40] sm:$0xff]
  %v396 = vld [vmem:[%s386 + $0x48] sm:$0xff]
  %v397 = vld [vmem:[%s386 + $0x50] sm:$0xff]
  %v398 = vld [vmem:[%s386 + $0x58] sm:$0xff]
  %v399 = vld [vmem:[%s386 + $0x60] sm:$0xff]
  %v400 = vld [vmem:[%s386 + $0x68] sm:$0xff]
  %v401 = vld [vmem:[%s386 + $0x70] sm:$0xff]
  %v402 = vld [vmem:[%s386 + $0x78] sm:$0xff]
  %v403 = vld [vmem:[%s386 + $0x80] sm:$0xff]
  %v404 = vld [vmem:[%s386 + $0x88] sm:$0xff]
  %v405 = vld [vmem:[%s386 + $0x90] sm:$0xff]
  %v406 = vld [vmem:[%s386 + $0x98] sm:$0xff]
  %v407 = vld [vmem:[%s386 + $0xa0] sm:$0xff]
  %v408 = vld [vmem:[%s386 + $0xa8] sm:$0xff]
  %v409 = vld [vmem:[%s386 + $0xb0] sm:$0xff]
  %v410 = vld [vmem:[%s386 + $0xb8] sm:$0xff]
  %v411 = vld [vmem:[%s386 + $0xc0] sm:$0xff]
  %v412 = vld [vmem:[%s386 + $0xc8] sm:$0xff]
  %v413 = vld [vmem:[%s386 + $0xd0] sm:$0xff]
  %v414 = vld [vmem:[%s386 + $0xd8] sm:$0xff]
  %v415 = vld [vmem:[%s386 + $0xe0] sm:$0xff]
  %v416 = vld [vmem:[%s386 + $0xe8] sm:$0xff]
  %v417 = vld [vmem:[%s386 + $0xf0] sm:$0xff]
  %v418 = vld [vmem:[%s386 + $0xf8] sm:$0xff]
  %v419 = vld [vmem:[%s386 + $0x100] sm:$0xff]
  %v420 = vld [vmem:[%s386 + $0x108] sm:$0x77]
  %v455 = vunpack.c.l.b16 %v387
  %v456 = vunpack.c.h.b16 %v387
  %v457 = vunpack.c.l.b16 %v388
  %v458 = vunpack.c.h.b16 %v388
  %v459 = vunpack.c.l.b16 %v389
  %v460 = vunpack.c.h.b16 %v389
  %v461 = vunpack.c.l.b16 %v390
  %v462 = vunpack.c.h.b16 %v390
  %v463 = vunpack.c.l.b16 %v391
  %v464 = vunpack.c.h.b16 %v391
  %v465 = vunpack.c.l.b16 %v392
  %v466 = vunpack.c.h.b16 %v392
  %v467 = vunpack.c.l.b16 %v393
  %v468 = vunpack.c.h.b16 %v393
  %v469 = vunpack.c.l.b16 %v394
  %v470 = vunpack.c.h.b16 %v394
  %v471 = vunpack.c.l.b16 %v395
  %v472 = vunpack.c.h.b16 %v395
  %v473 = vunpack.c.l.b16 %v396
  %v474 = vunpack.c.h.b16 %v396
  %v475 = vunpack.c.l.b16 %v397
  %v476 = vunpack.c.h.b16 %v397
  %v477 = vunpack.c.l.b16 %v398
  %v478 = vunpack.c.h.b16 %v398
  %v479 = vunpack.c.l.b16 %v399
  %v480 = vunpack.c.h.b16 %v399
  %v481 = vunpack.c.l.b16 %v400
  %v482 = vunpack.c.h.b16 %v400
  %v483 = vunpack.c.l.b16 %v401
  %v484 = vunpack.c.h.b16 %v401
  %v485 = vunpack.c.l.b16 %v402
  %v486 = vunpack.c.h.b16 %v402
  %v487 = vunpack.c.l.b16 %v403
  %v488 = vunpack.c.h.b16 %v403
  %v489 = vunpack.c.l.b16 %v404
  %v490 = vunpack.c.h.b16 %v404
  %v491 = vunpack.c.l.b16 %v405
  %v492 = vunpack.c.h.b16 %v405
  %v493 = vunpack.c.l.b16 %v406
  %v494 = vunpack.c.h.b16 %v406
  %v495 = vunpack.c.l.b16 %v407
  %v496 = vunpack.c.h.b16 %v407
  %v497 = vunpack.c.l.b16 %v408
  %v498 = vunpack.c.h.b16 %v408
  %v499 = vunpack.c.l.b16 %v409
  %v500 = vunpack.c.h.b16 %v409
  %v501 = vunpack.c.l.b16 %v410
  %v502 = vunpack.c.h.b16 %v410
  %v503 = vunpack.c.l.b16 %v411
  %v504 = vunpack.c.h.b16 %v411
  %v505 = vunpack.c.l.b16 %v412
  %v506 = vunpack.c.h.b16 %v412
  %v507 = vunpack.c.l.b16 %v413
  %v508 = vunpack.c.h.b16 %v413
  %v509 = vunpack.c.l.b16 %v414
  %v510 = vunpack.c.h.b16 %v414
  %v511 = vunpack.c.l.b16 %v415
  %v512 = vunpack.c.h.b16 %v415
  %v513 = vunpack.c.l.b16 %v416
  %v514 = vunpack.c.h.b16 %v416
  %v515 = vunpack.c.l.b16 %v417
  %v516 = vunpack.c.h.b16 %v417
  %v517 = vunpack.c.l.b16 %v418
  %v518 = vunpack.c.h.b16 %v418
  %v519 = vunpack.c.l.b16 %v419
  %v520 = vunpack.c.h.b16 %v419
  %v521 = vunpack.c.l.b16 %v420
  %v522 = vunpack.c.h.b16 %v420
  %v523 = vpack.c.b16 %v457, %v455
  %v524 = vpack.c.b16 %v458, %v456
  %v525 = vpack.c.b16 %v461, %v459
  %v526 = vpack.c.b16 %v462, %v460
  %v527 = vpack.c.b16 %v465, %v463
  %v528 = vpack.c.b16 %v466, %v464
  %v529 = vpack.c.b16 %v469, %v467
  %v530 = vpack.c.b16 %v470, %v468
  %v531 = vpack.c.b16 %v473, %v471
  %v532 = vpack.c.b16 %v474, %v472
  %v533 = vpack.c.b16 %v477, %v475
  %v534 = vpack.c.b16 %v478, %v476
  %v535 = vpack.c.b16 %v481, %v479
  %v536 = vpack.c.b16 %v482, %v480
  %v537 = vpack.c.b16 %v485, %v483
  %v538 = vpack.c.b16 %v486, %v484
  %v539 = vpack.c.b16 %v489, %v487
  %v540 = vpack.c.b16 %v490, %v488
  %v541 = vpack.c.b16 %v493, %v491
  %v542 = vpack.c.b16 %v494, %v492
  %v543 = vpack.c.b16 %v497, %v495
  %v544 = vpack.c.b16 %v498, %v496
  %v545 = vpack.c.b16 %v501, %v499
  %v546 = vpack.c.b16 %v502, %v500
  %v547 = vpack.c.b16 %v505, %v503
  %v548 = vpack.c.b16 %v506, %v504
  %v549 = vpack.c.b16 %v509, %v507
  %v550 = vpack.c.b16 %v510, %v508
  %v551 = vpack.c.b16 %v513, %v511
  %v552 = vpack.c.b16 %v514, %v512
  %v553 = vpack.c.b16 %v517, %v515
  %v554 = vpack.c.b16 %v518, %v516
  %v555 = vpack.c.b16 %v521, %v519
  %v556 = vpack.c.b16 %v522, %v520
  %v590 = vsel %vm273, %v555, 0
  %v593 = vsel %vm273, %v556, 0
  %595 = vmatprep.subr.bf16.mxu0 %v524
  %596 = vmatpush1.bf16.msra.mxu0 %v523
  %597 = vmatprep.subr.bf16.mxu0 %v526
  %598 = vmatpush1.bf16.msra.mxu0 %v525
  %599 = vmatprep.subr.bf16.mxu0 %v528
  %600 = vmatpush1.bf16.msra.mxu0 %v527
  %601 = vmatprep.subr.bf16.mxu0 %v530
  %602 = vmatpush1.bf16.msra.mxu0 %v529
  %603 = vmatprep.subr.bf16.mxu0 %v532
  %604 = vmatpush1.bf16.msra.mxu0 %v531
  %605 = vmatprep.subr.bf16.mxu0 %v534
  %606 = vmatpush1.bf16.msra.mxu0 %v533
  %607 = vmatprep.subr.bf16.mxu0 %v536
  %608 = vmatpush1.bf16.msra.mxu0 %v535
  %609 = vmatprep.subr.bf16.mxu0 %v538
  %610 = vmatpush1.bf16.msra.mxu0 %v537
  %611 = vmatprep.subr.bf16.mxu0 %v540
  %612 = vmatpush1.bf16.msra.mxu0 %v539
  %613 = vmatprep.subr.bf16.mxu0 %v542
  %614 = vmatpush1.bf16.msra.mxu0 %v541
  %615 = vmatprep.subr.bf16.mxu0 %v544
  %616 = vmatpush1.bf16.msra.mxu0 %v543
  %617 = vmatprep.subr.bf16.mxu0 %v546
  %618 = vmatpush1.bf16.msra.mxu0 %v545
  %619 = vmatprep.subr.bf16.mxu0 %v548
  %620 = vmatpush1.bf16.msra.mxu0 %v547
  %621 = vmatprep.subr.bf16.mxu0 %v550
  %622 = vmatpush1.bf16.msra.mxu0 %v549
  %623 = vmatprep.subr.bf16.mxu0 %v552
  %624 = vmatpush1.bf16.msra.mxu0 %v551
  %625 = vmatprep.subr.bf16.mxu0 %v554
  %626 = vmatpush1.bf16.msra.mxu0 %v553
  %627 = vmatprep.mubr.bf16.mxu0 %v89
  %628 = vmatmul.mubr.bf16.gmra.mrb[0].mxu0 %v88
  %v629 = vpop.f32.mrb[0].mxu0
  %v630 = vadd.f32 0.0, %v629
  %v631 = vpop.f32.mrb[0].mxu0
  %v632 = vadd.f32 0.0, %v631
  %v633 = vpop.f32.mrb[0].mxu0
  %v634 = vadd.f32 0.0, %v633
  %v635 = vpop.f32.mrb[0].mxu0
  %v636 = vadd.f32 0.0, %v635
  %637 = vmatprep.mubr.bf16.mxu0 %v92
  %638 = vmatmul.mubr.bf16.gmra.mrb[0].mxu0 %v91
  %v639 = vpop.f32.mrb[0].mxu0
  %v640 = vadd.f32 0.0, %v639
  %v641 = vpop.f32.mrb[0].mxu0
  %v642 = vadd.f32 0.0, %v641
  %v643 = vpop.f32.mrb[0].mxu0
  %v644 = vadd.f32 0.0, %v643
  %v645 = vpop.f32.mrb[0].mxu0
  %v646 = vadd.f32 0.0, %v645
  %647 = vdwg.mxu0
  %648 = vmatprep.subr.bf16.mxu0 %v593
  %649 = vmatpush1.bf16.msra.mxu0 %v590
  %650 = vmatprep.subr.bf16.mxu0 0
  %651 = vmatpush1.bf16.msra.mxu0 0
  %652 = vmatprep.subr.bf16.mxu0 0
  %653 = vmatpush1.bf16.msra.mxu0 0
  %654 = vmatprep.subr.bf16.mxu0 0
  %655 = vmatpush1.bf16.msra.mxu0 0
  %656 = vmatprep.subr.bf16.mxu0 0
  %657 = vmatpush1.bf16.msra.mxu0 0
  %658 = vmatprep.subr.bf16.mxu0 0
  %659 = vmatpush1.bf16.msra.mxu0 0
  %660 = vmatprep.subr.bf16.mxu0 0
  %661 = vmatpush1.bf16.msra.mxu0 0
  %662 = vmatprep.subr.bf16.mxu0 0
  %663 = vmatpush1.bf16.msra.mxu0 0
  %664 = vmatprep.subr.bf16.mxu0 0
  %665 = vmatpush1.bf16.msra.mxu0 0
  %666 = vmatprep.subr.bf16.mxu0 0
  %667 = vmatpush1.bf16.msra.mxu0 0
  %668 = vmatprep.subr.bf16.mxu0 0
  %669 = vmatpush1.bf16.msra.mxu0 0
  %670 = vmatprep.subr.bf16.mxu0 0
  %671 = vmatpush1.bf16.msra.mxu0 0
  %672 = vmatprep.subr.bf16.mxu0 0
  %673 = vmatpush1.bf16.msra.mxu0 0
  %674 = vmatprep.subr.bf16.mxu0 0
  %675 = vmatpush1.bf16.msra.mxu0 0
  %676 = vmatprep.subr.bf16.mxu0 0
  %677 = vmatpush1.bf16.msra.mxu0 0
  %678 = vmatprep.subr.bf16.mxu0 0
  %679 = vmatpush1.bf16.msra.mxu0 0
  %680 = vmatprep.mubr.bf16.mxu0 0
  %681 = vmatmul.mubr.bf16.gmra.mrb[0].mxu0 %v268
  %v682 = vpop.f32.mrb[0].mxu0
  %v683 = vadd.f32 %v630, %v682
  %v684 = vpop.f32.mrb[0].mxu0
  %v685 = vadd.f32 %v632, %v684
  %v686 = vpop.f32.mrb[0].mxu0
  %v687 = vadd.f32 %v634, %v686
  %v688 = vpop.f32.mrb[0].mxu0
  %v689 = vadd.f32 %v636, %v688
  %690 = vmatprep.mubr.bf16.mxu0 0
  %691 = vmatmul.mubr.bf16.gmra.mrb[0].mxu0 %v271
  %v692 = vpop.f32.mrb[0].mxu0
  %v693 = vadd.f32 %v640, %v692
  %v694 = vpop.f32.mrb[0].mxu0
  %v695 = vadd.f32 %v642, %v694
  %v696 = vpop.f32.mrb[0].mxu0
  %v697 = vadd.f32 %v644, %v696
  %v698 = vpop.f32.mrb[0].mxu0
  %v699 = vadd.f32 %v646, %v698
  %700 = vdwg.mxu0
  %v701 = vmax.f32 %v368, %v683
  %v702 = vmax.f32 %v370, %v685
  %v703 = vmax.f32 %v372, %v687
  %v704 = vmax.f32 %v374, %v689
  %v705 = vmax.f32 %v378, %v693
  %v706 = vmax.f32 %v380, %v695
  %v707 = vmax.f32 %v382, %v697
  %v708 = vmax.f32 %v384, %v699
  %s709 = scalar_lea.vmem %s0, 48
  %v710 = vld [vmem:[%s709] sm:$0xff]
  %v711 = vld [vmem:[%s709 + $0x8] sm:$0xf]
  %v712 = vld [vmem:[%s709 + $0xc] sm:$0xff]
  %v713 = vld [vmem:[%s709 + $0x14] sm:$0xf]
  %v714 = vld [vmem:[%s709 + $0x18] sm:$0xff]
  %v715 = vld [vmem:[%s709 + $0x20] sm:$0xf]
  %v716 = vld [vmem:[%s709 + $0x24] sm:$0x33]
  %v717 = vld [vmem:[%s709 + $0x2c] sm:$0x3]
  %v726 = vunpack.c.l.b16 %v710
  %v727 = vunpack.c.h.b16 %v710
  %v728 = vunpack.c.l.b16 %v711
  %v729 = vunpack.c.l.b16 %v712
  %v730 = vunpack.c.h.b16 %v712
  %v731 = vunpack.c.l.b16 %v713
  %v732 = vunpack.c.l.b16 %v714
  %v733 = vunpack.c.h.b16 %v714
  %v734 = vunpack.c.l.b16 %v715
  %v735 = vunpack.c.l.b16 %v716
  %v736 = vunpack.c.h.b16 %v716
  %v737 = vunpack.c.l.b16 %v717
  %v738 = vpack.c.b16 %v729, %v726
  %v739 = vpack.c.b16 %v730, %v727
  %v740 = vpack.c.b16 %v731, %v728
  %v741 = vpack.c.b16 %v735, %v732
  %v742 = vpack.c.b16 %v736, %v733
  %v743 = vpack.c.b16 %v737, %v734
  %v749 = vsel %vm266, %v740, 0
  %v752 = vsel %vm266, %v743, 0
  %754 = vmatprep.subr.bf16.mxu0 %v201
  %755 = vmatpush1.bf16.msra.mxu0 %v200
  %756 = vmatprep.subr.bf16.mxu0 %v203
  %757 = vmatpush1.bf16.msra.mxu0 %v202
  %758 = vmatprep.subr.bf16.mxu0 %v205
  %759 = vmatpush1.bf16.msra.mxu0 %v204
  %760 = vmatprep.subr.bf16.mxu0 %v207
  %761 = vmatpush1.bf16.msra.mxu0 %v206
  %762 = vmatprep.subr.bf16.mxu0 %v209
  %763 = vmatpush1.bf16.msra.mxu0 %v208
  %764 = vmatprep.subr.bf16.mxu0 %v211
  %765 = vmatpush1.bf16.msra.mxu0 %v210
  %766 = vmatprep.subr.bf16.mxu0 %v213
  %767 = vmatpush1.bf16.msra.mxu0 %v212
  %768 = vmatprep.subr.bf16.mxu0 %v215
  %769 = vmatpush1.bf16.msra.mxu0 %v214
  %770 = vmatprep.subr.bf16.mxu0 %v217
  %771 = vmatpush1.bf16.msra.mxu0 %v216
  %772 = vmatprep.subr.bf16.mxu0 %v219
  %773 = vmatpush1.bf16.msra.mxu0 %v218
  %774 = vmatprep.subr.bf16.mxu0 %v221
  %775 = vmatpush1.bf16.msra.mxu0 %v220
  %776 = vmatprep.subr.bf16.mxu0 %v223
  %777 = vmatpush1.bf16.msra.mxu0 %v222
  %778 = vmatprep.subr.bf16.mxu0 %v225
  %779 = vmatpush1.bf16.msra.mxu0 %v224
  %780 = vmatprep.subr.bf16.mxu0 %v227
  %781 = vmatpush1.bf16.msra.mxu0 %v226
  %782 = vmatprep.subr.bf16.mxu0 %v229
  %783 = vmatpush1.bf16.msra.mxu0 %v228
  %784 = vmatprep.subr.bf16.mxu0 %v231
  %785 = vmatpush1.bf16.msra.mxu0 %v230
  %786 = vmatprep.mubr.bf16.mxu0 %v739
  %787 = vmatmul.mubr.bf16.gmra.mrb[0].mxu0 %v738
  %v788 = vpop.f32.mrb[0].mxu0
  %v789 = vadd.f32 0.0, %v788
  %v790 = vpop.f32.mrb[0].mxu0
  %v791 = vadd.f32 0.0, %v790
  %v792 = vpop.f32.mrb[0].mxu0
  %v793 = vadd.f32 0.0, %v792
  %v794 = vpop.f32.mrb[0].mxu0
  %v795 = vadd.f32 0.0, %v794
  %796 = vmatprep.mubr.bf16.mxu0 %v742
  %797 = vmatmul.mubr.bf16.gmra.mrb[0].mxu0 %v741
  %v798 = vpop.f32.mrb[0].mxu0
  %v799 = vadd.f32 0.0, %v798
  %v800 = vpop.f32.mrb[0].mxu0
  %v801 = vadd.f32 0.0, %v800
  %v802 = vpop.f32.mrb[0].mxu0
  %v803 = vadd.f32 0.0, %v802
  %v804 = vpop.f32.mrb[0].mxu0
  %v805 = vadd.f32 0.0, %v804
  %806 = vdwg.mxu0
  %807 = vmatprep.subr.bf16.mxu0 %v278
  %808 = vmatpush1.bf16.msra.mxu0 %v275
  %809 = vmatprep.subr.bf16.mxu0 0
  %810 = vmatpush1.bf16.msra.mxu0 0
  %811 = vmatprep.subr.bf16.mxu0 0
  %812 = vmatpush1.bf16.msra.mxu0 0
  %813 = vmatprep.subr.bf16.mxu0 0
  %814 = vmatpush1.bf16.msra.mxu0 0
  %815 = vmatprep.subr.bf16.mxu0 0
  %816 = vmatpush1.bf16.msra.mxu0 0
  %817 = vmatprep.subr.bf16.mxu0 0
  %818 = vmatpush1.bf16.msra.mxu0 0
  %819 = vmatprep.subr.bf16.mxu0 0
  %820 = vmatpush1.bf16.msra.mxu0 0
  %821 = vmatprep.subr.bf16.mxu0 0
  %822 = vmatpush1.bf16.msra.mxu0 0
  %823 = vmatprep.subr.bf16.mxu0 0
  %824 = vmatpush1.bf16.msra.mxu0 0
  %825 = vmatprep.subr.bf16.mxu0 0
  %826 = vmatpush1.bf16.msra.mxu0 0
  %827 = vmatprep.subr.bf16.mxu0 0
  %828 = vmatpush1.bf16.msra.mxu0 0
  %829 = vmatprep.subr.bf16.mxu0 0
  %830 = vmatpush1.bf16.msra.mxu0 0
  %831 = vmatprep.subr.bf16.mxu0 0
  %832 = vmatpush1.bf16.msra.mxu0 0
  %833 = vmatprep.subr.bf16.mxu0 0
  %834 = vmatpush1.bf16.msra.mxu0 0
  %835 = vmatprep.subr.bf16.mxu0 0
  %836 = vmatpush1.bf16.msra.mxu0 0
  %837 = vmatprep.subr.bf16.mxu0 0
  %838 = vmatpush1.bf16.msra.mxu0 0
  %839 = vmatprep.mubr.bf16.mxu0 0
  %840 = vmatmul.mubr.bf16.gmra.mrb[0].mxu0 %v749
  %v841 = vpop.f32.mrb[0].mxu0
  %v842 = vadd.f32 %v789, %v841
  %v843 = vpop.f32.mrb[0].mxu0
  %v844 = vadd.f32 %v791, %v843
  %v845 = vpop.f32.mrb[0].mxu0
  %v846 = vadd.f32 %v793, %v845
  %v847 = vpop.f32.mrb[0].mxu0
  %v848 = vadd.f32 %v795, %v847
  %849 = vmatprep.mubr.bf16.mxu0 0
  %850 = vmatmul.mubr.bf16.gmra.mrb[0].mxu0 %v752
  %v851 = vpop.f32.mrb[0].mxu0
  %v852 = vadd.f32 %v799, %v851
  %v853 = vpop.f32.mrb[0].mxu0
  %v854 = vadd.f32 %v801, %v853
  %v855 = vpop.f32.mrb[0].mxu0
  %v856 = vadd.f32 %v803, %v855
  %v857 = vpop.f32.mrb[0].mxu0
  %v858 = vadd.f32 %v805, %v857
  %859 = vdwg.mxu0
  %v860 = vmax.f32 %v701, %v842
  %v861 = vmax.f32 %v702, %v844
  %v862 = vmax.f32 %v703, %v846
  %v863 = vmax.f32 %v704, %v848
  %v864 = vmax.f32 %v705, %v852
  %v865 = vmax.f32 %v706, %v854
  %v866 = vmax.f32 %v707, %v856
  %v867 = vmax.f32 %v708, %v858
  %868 = vmatprep.subr.bf16.mxu0 %v524
  %869 = vmatpush1.bf16.msra.mxu0 %v523
  %870 = vmatprep.subr.bf16.mxu0 %v526
  %871 = vmatpush1.bf16.msra.mxu0 %v525
  %872 = vmatprep.subr.bf16.mxu0 %v528
  %873 = vmatpush1.bf16.msra.mxu0 %v527
  %874 = vmatprep.subr.bf16.mxu0 %v530
  %875 = vmatpush1.bf16.msra.mxu0 %v529
  %876 = vmatprep.subr.bf16.mxu0 %v532
  %877 = vmatpush1.bf16.msra.mxu0 %v531
  %878 = vmatprep.subr.bf16.mxu0 %v534
  %879 = vmatpush1.bf16.msra.mxu0 %v533
  %880 = vmatprep.subr.bf16.mxu0 %v536
  %881 = vmatpush1.bf16.msra.mxu0 %v535
  %882 = vmatprep.subr.bf16.mxu0 %v538
  %883 = vmatpush1.bf16.msra.mxu0 %v537
  %884 = vmatprep.subr.bf16.mxu0 %v540
  %885 = vmatpush1.bf16.msra.mxu0 %v539
  %886 = vmatprep.subr.bf16.mxu0 %v542
  %887 = vmatpush1.bf16.msra.mxu0 %v541
  %888 = vmatprep.subr.bf16.mxu0 %v544
  %889 = vmatpush1.bf16.msra.mxu0 %v543
  %890 = vmatprep.subr.bf16.mxu0 %v546
  %891 = vmatpush1.bf16.msra.mxu0 %v545
  %892 = vmatprep.subr.bf16.mxu0 %v548
  %893 = vmatpush1.bf16.msra.mxu0 %v547
  %894 = vmatprep.subr.bf16.mxu0 %v550
  %895 = vmatpush1.bf16.msra.mxu0 %v549
  %896 = vmatprep.subr.bf16.mxu0 %v552
  %897 = vmatpush1.bf16.msra.mxu0 %v551
  %898 = vmatprep.subr.bf16.mxu0 %v554
  %899 = vmatpush1.bf16.msra.mxu0 %v553
  %900 = vmatprep.mubr.bf16.mxu0 %v739
  %901 = vmatmul.mubr.bf16.gmra.mrb[0].mxu0 %v738
  %v902 = vpop.f32.mrb[0].mxu0
  %v903 = vadd.f32 0.0, %v902
  %v904 = vpop.f32.mrb[0].mxu0
  %v905 = vadd.f32 0.0, %v904
  %v906 = vpop.f32.mrb[0].mxu0
  %v907 = vadd.f32 0.0, %v906
  %v908 = vpop.f32.mrb[0].mxu0
  %v909 = vadd.f32 0.0, %v908
  %910 = vmatprep.mubr.bf16.mxu0 %v742
  %911 = vmatmul.mubr.bf16.gmra.mrb[0].mxu0 %v741
  %v912 = vpop.f32.mrb[0].mxu0
  %v913 = vadd.f32 0.0, %v912
  %v914 = vpop.f32.mrb[0].mxu0
  %v915 = vadd.f32 0.0, %v914
  %v916 = vpop.f32.mrb[0].mxu0
  %v917 = vadd.f32 0.0, %v916
  %v918 = vpop.f32.mrb[0].mxu0
  %v919 = vadd.f32 0.0, %v918
  %920 = vdwg.mxu0
  %921 = vmatprep.subr.bf16.mxu0 %v593
  %922 = vmatpush1.bf16.msra.mxu0 %v590
  %923 = vmatprep.subr.bf16.mxu0 0
  %924 = vmatpush1.bf16.msra.mxu0 0
  %925 = vmatprep.subr.bf16.mxu0 0
  %926 = vmatpush1.bf16.msra.mxu0 0
  %927 = vmatprep.subr.bf16.mxu0 0
  %928 = vmatpush1.bf16.msra.mxu0 0
  %929 = vmatprep.subr.bf16.mxu0 0
  %930 = vmatpush1.bf16.msra.mxu0 0
  %931 = vmatprep.subr.bf16.mxu0 0
  %932 = vmatpush1.bf16.msra.mxu0 0
  %933 = vmatprep.subr.bf16.mxu0 0
  %934 = vmatpush1.bf16.msra.mxu0 0
  %935 = vmatprep.subr.bf16.mxu0 0
  %936 = vmatpush1.bf16.msra.mxu0 0
  %937 = vmatprep.subr.bf16.mxu0 0
  %938 = vmatpush1.bf16.msra.mxu0 0
  %939 = vmatprep.subr.bf16.mxu0 0
  %940 = vmatpush1.bf16.msra.mxu0 0
  %941 = vmatprep.subr.bf16.mxu0 0
  %942 = vmatpush1.bf16.msra.mxu0 0
  %943 = vmatprep.subr.bf16.mxu0 0
  %944 = vmatpush1.bf16.msra.mxu0 0
  %945 = vmatprep.subr.bf16.mxu0 0
  %946 = vmatpush1.bf16.msra.mxu0 0
  %947 = vmatprep.subr.bf16.mxu0 0
  %948 = vmatpush1.bf16.msra.mxu0 0
  %949 = vmatprep.subr.bf16.mxu0 0
  %950 = vmatpush1.bf16.msra.mxu0 0
  %951 = vmatprep.subr.bf16.mxu0 0
  %952 = vmatpush1.bf16.msra.mxu0 0
  %953 = vmatprep.mubr.bf16.mxu0 0
  %954 = vmatmul.mubr.bf16.gmra.mrb[0].mxu0 %v749
  %v955 = vpop.f32.mrb[0].mxu0
  %v956 = vadd.f32 %v903, %v955
  %v957 = vpop.f32.mrb[0].mxu0
  %v958 = vadd.f32 %v905, %v957
  %v959 = vpop.f32.mrb[0].mxu0
  %v960 = vadd.f32 %v907, %v959
  %v961 = vpop.f32.mrb[0].mxu0
  %v962 = vadd.f32 %v909, %v961
  %963 = vmatprep.mubr.bf16.mxu0 0
  %964 = vmatmul.mubr.bf16.gmra.mrb[0].mxu0 %v752
  %v965 = vpop.f32.mrb[0].mxu0
  %v966 = vadd.f32 %v913, %v965
  %v967 = vpop.f32.mrb[0].mxu0
  %v968 = vadd.f32 %v915, %v967
  %v969 = vpop.f32.mrb[0].mxu0
  %v970 = vadd.f32 %v917, %v969
  %v971 = vpop.f32.mrb[0].mxu0
  %v972 = vadd.f32 %v919, %v971
  %973 = vdwg.mxu0
  %v974 = vmax.f32 %v860, %v956
  %v975 = vmax.f32 %v861, %v958
  %v976 = vmax.f32 %v862, %v960
  %v977 = vmax.f32 %v863, %v962
  %v978 = vmax.f32 %v864, %v966
  %v979 = vmax.f32 %v865, %v968
  %v980 = vmax.f32 %v866, %v970
  %v981 = vmax.f32 %v867, %v972
  %v982 = vld [vmem:[%s2] sm:$0x3]
  %v984 = vlaneseq
  %v985 = vshrl.u32 %v984, 7
  %v986 = vsub.s32 0, %v985
  %v987 = vrot.slane %v982, %v986
  %v988 = vlaneseq
  %v989 = vshrl.u32 %v988, 7
  %v990 = vsub.s32 1, %v989
  %v991 = vrot.slane %v982, %v990
  %v994 = vadd.f32 %v974, %v987
  %v995 = vadd.f32 %v975, %v991
  %v996 = vadd.f32 %v976, %v987
  %v997 = vadd.f32 %v977, %v991
  %v998 = vadd.f32 %v978, %v987
  %v999 = vadd.f32 %v979, %v991
  %v1000 = vadd.f32 %v980, %v987
  %v1001 = vadd.f32 %v981, %v991
  %v1002 = vmax.f32 %v994, 0.0
  %v1003 = vmax.f32 %v995, 0.0
  %v1004 = vmax.f32 %v996, 0.0
  %v1005 = vmax.f32 %v997, 0.0
  %v1006 = vmax.f32 %v998, 0.0
  %v1007 = vmax.f32 %v999, 0.0
  %v1008 = vmax.f32 %v1000, 0.0
  %v1009 = vmax.f32 %v1001, 0.0
  %v1010 = vld [vmem:[%s3] sm:$0xff]
  %v1011 = vld [vmem:[%s3 + $0x8] sm:$0xff]
  %v1012 = vld [vmem:[%s3 + $0x10] sm:$0xff]
  %v1013 = vld [vmem:[%s3 + $0x18] sm:$0xff]
  %v1014 = vld [vmem:[%s3 + $0x20] sm:$0xff]
  %v1015 = vld [vmem:[%s3 + $0x28] sm:$0xff]
  %v1016 = vld [vmem:[%s3 + $0x30] sm:$0xf]
  %v1017 = vld [vmem:[%s3 + $0x38] sm:$0xf]
  %v1018 = vmul.f32 %v1002, %v1010
  %v1019 = vmul.f32 %v1003, %v1011
  %v1020 = vmul.f32 %v1004, %v1012
  %v1021 = vmul.f32 %v1005, %v1013
  %v1022 = vmul.f32 %v1006, %v1014
  %v1023 = vmul.f32 %v1007, %v1015
  %v1024 = vmul.f32 %v1008, %v1016
  %v1025 = vmul.f32 %v1009, %v1017
  %v1026 = vld [vmem:[%s4] sm:$0x3]
  %vm1027 = vcmask 228352
  %v1029 = vsel %vm1027, %v1026, 0
  %vm1031 = vcmask 1043456
  %v1033 = vsel %vm1031, %v1024, 0
  %v1036 = vsel %vm1031, %v1025, 0
  %1038 = vmatprep.subr.mxu0 %v1019
  %1039 = vmatpush1.msra.mxu0 %v1018
  %1040 = vmatprep.subr.mxu0 %v1021
  %1041 = vmatpush1.msra.mxu0 %v1020
  %1042 = vmatprep.subr.mxu0 %v1023
  %1043 = vmatpush1.msra.mxu0 %v1022
  %1044 = vmatprep.subr.mxu0 %v1036
  %1045 = vmatpush1.msra.mxu0 %v1033
  %1046 = vmatprep.subr.mxu0 0.0
  %1047 = vmatpush1.msra.mxu0 0.0
  %1048 = vmatprep.subr.mxu0 0.0
  %1049 = vmatpush1.msra.mxu0 0.0
  %1050 = vmatprep.subr.mxu0 0.0
  %1051 = vmatpush1.msra.mxu0 0.0
  %1052 = vmatprep.subr.mxu0 0.0
  %1053 = vmatpush1.msra.mxu0 0.0
  %1054 = vmatprep.subr.mxu0 0.0
  %1055 = vmatpush1.msra.mxu0 0.0
  %1056 = vmatprep.subr.mxu0 0.0
  %1057 = vmatpush1.msra.mxu0 0.0
  %1058 = vmatprep.subr.mxu0 0.0
  %1059 = vmatpush1.msra.mxu0 0.0
  %1060 = vmatprep.subr.mxu0 0.0
  %1061 = vmatpush1.msra.mxu0 0.0
  %1062 = vmatprep.subr.mxu0 0.0
  %1063 = vmatpush1.msra.mxu0 0.0
  %1064 = vmatprep.subr.mxu0 0.0
  %1065 = vmatpush1.msra.mxu0 0.0
  %1066 = vmatprep.subr.mxu0 0.0
  %1067 = vmatpush1.msra.mxu0 0.0
  %1068 = vmatprep.subr.mxu0 0.0
  %1069 = vmatpush1.msra.mxu0 0.0
  %1070 = vmatprep.subr.mxu0 0.0
  %1071 = vmatpush1.msra.mxu0 0.0
  %1072 = vmatprep.subr.mxu0 0.0
  %1073 = vmatpush1.msra.mxu0 0.0
  %1074 = vmatprep.subr.mxu0 0.0
  %1075 = vmatpush1.msra.mxu0 0.0
  %1076 = vmatprep.subr.mxu0 0.0
  %1077 = vmatpush1.msra.mxu0 0.0
  %1078 = vmatprep.subr.mxu0 0.0
  %1079 = vmatpush1.msra.mxu0 0.0
  %1080 = vmatprep.subr.mxu0 0.0
  %1081 = vmatpush1.msra.mxu0 0.0
  %1082 = vmatprep.subr.mxu0 0.0
  %1083 = vmatpush1.msra.mxu0 0.0
  %1084 = vmatprep.subr.mxu0 0.0
  %1085 = vmatpush1.msra.mxu0 0.0
  %1086 = vmatprep.subr.mxu0 0.0
  %1087 = vmatpush1.msra.mxu0 0.0
  %1088 = vmatprep.subr.mxu0 0.0
  %1089 = vmatpush1.msra.mxu0 0.0
  %1090 = vmatprep.subr.mxu0 0.0
  %1091 = vmatpush1.msra.mxu0 0.0
  %1092 = vmatprep.subr.mxu0 0.0
  %1093 = vmatpush1.msra.mxu0 0.0
  %1094 = vmatprep.subr.mxu0 0.0
  %1095 = vmatpush1.msra.mxu0 0.0
  %1096 = vmatprep.subr.mxu0 0.0
  %1097 = vmatpush1.msra.mxu0 0.0
  %1098 = vmatprep.subr.mxu0 0.0
  %1099 = vmatpush1.msra.mxu0 0.0
  %1100 = vmatprep.subr.mxu0 0.0
  %1101 = vmatpush1.msra.mxu0 0.0
  %1102 = vmatprep.mubr.f32.mxu0 0.0
  %1103 = vmatmul.mubr.f32.gmra.mrb[0].mxu0 %v1029
  %v1104 = vpop.f32.mrb[0].mxu0
  %v1105 = vadd.f32 0.0, %v1104
  %v1106 = vpop.f32.mrb[0].mxu0
  %v1107 = vadd.f32 0.0, %v1106
  %1108 = vdwg.mxu0
  %vm1109 = vcmask 1041408
  %v1110 = vsel %vm1109, %v1105, 0.0
  %vm1111 = vcmask 779264
  %v1112 = vsel %vm1111, %v1107, 0.0
  %v1113 = vadd.f32 %v1110, %v1112
  %1114 = vadd.xlane.f32.xlu0 %v1113
  %v1115 = vpop.xlane.xlu0 %1114
  %v1116 = vld [vmem:[#allocation2] sm:$0x1]
  %v1118 = vlaneseq
  %v1119 = vshrl.u32 %v1118, 7
  %v1120 = vsub.s32 0, %v1119
  %v1121 = vrot.slane %v1116, %v1120
  %v1123 = vadd.f32 %v1115, %v1121
  %v1124 = vmul.f32 %v1123, 0.5
  %v1125 = vtanh.pop %v1124
  %v1126 = vadd.f32 %v1125, 1.0
  %v1127 = vmul.f32 %v1126, 0.5
  %vm1128 = vcmask 1024
  %1129 = vst.msk [vmem:[%s6] sm:$0x3] %vm1128, %v1127
  // Predicated region
  $region26: #{simple_cnn_forward.1} parent=0 // pred_check
    _
  $region27: #{simple_cnn_forward.1} parent=0 // pred_check_branch
    %1131 = sbr.rel (0) target = $region29
  $region28: #{simple_cnn_forward.1} parent=0 // pred_region
    _
  $region29: #{simple_cnn_forward.1} parent=0 // pred_fallthru
    _
  // Predicated region
  $region30: #{simple_cnn_forward.1} parent=0 // pred_check
    _
  $region31: #{simple_cnn_forward.1} parent=0 // pred_check_branch
    %1133 = sbr.rel (0) target = $region33
  $region32: #{simple_cnn_forward.1} parent=0 // pred_region
    _
  $region33: #{simple_cnn_forward.1} parent=0 // pred_fallthru
    _

</llo_original>
